<compile_context>
chip_gen: v6e
topology: v6e:2x2x1
jax: 0.10.0
libtpu: 0.0.40
codegen_flags: <defaults>
</compile_context>

<pallas_src>
from functools import partial

import jax
import jax.numpy as jnp
from jax.experimental import pallas as pl
from jax.experimental.pallas import tpu as pltpu


# ---------------------------------------------------------------------------
# Fused kernel: one block of Bt batch elements, native (B, C, L) layout.
#   x_ref : (Bt, C, L) VMEM block, input dtype
#   t_ref : (C, C)     VMEM, tridiagonal conv matrix built from the 3 taps
#   o_ref : (Bt, C, L) VMEM block, same dtype as the input
# ---------------------------------------------------------------------------
def _eca_kernel(x_ref, t_ref, o_ref, *, inv_l):
    # AdaptiveAvgPool1d(1): mean over L (lane-axis reduction), fp32 accumulate.
    m = jnp.sum(x_ref[...].astype(jnp.float32), axis=-1) * inv_l           # (Bt, C)
    # Conv1d(1, 1, 3, padding=1, bias=False) across the channel axis:
    #   pre[b, c] = w0*m[b, c-1] + w1*m[b, c] + w2*m[b, c+1]  (zeros at edges)
    # expressed as a tiny matmul with a tridiagonal matrix (robust lowering,
    # no lane/sublane rolls needed, boundary padding encoded in T).
    pre = jnp.dot(m, t_ref[...], preferred_element_type=jnp.float32)        # (Bt, C)
    gate = 1.0 / (1.0 + jnp.exp(-pre))                                       # sigmoid
    # Gate broadcast over L.  Re-read the block from VMEM (cheap vld) instead
    # of keeping the captured slab live in vregs; store in the input dtype.
    o_ref[...] = (x_ref[...] * gate[:, :, None]).astype(o_ref.dtype)


def _largest_divisor_at_most(n, cap):
    cap = max(1, min(n, cap))
    while n % cap:
        cap -= 1
    return cap


def _tridiag_from_taps(w3, C):
    """(C, C) matrix T with T[i, c] = w3[i - c + 1] for |i - c| <= 1 else 0,
    so that (m @ T)[b, c] = w0*m[b,c-1] + w1*m[b,c] + w2*m[b,c+1]."""
    i = jnp.arange(C)
    d = i[:, None] - i[None, :]
    w3 = w3.astype(jnp.float32)
    return (jnp.where(d == -1, 1.0, 0.0) * w3[0]
            + jnp.where(d == 0, 1.0, 0.0) * w3[1]
            + jnp.where(d == 1, 1.0, 0.0) * w3[2]).astype(jnp.float32)


@jax.jit
def eca_forward(x, w3):
    """ECALayer forward.  x: (B, C, L) float; w3: (3,) conv taps.  -> (B, C, L), x.dtype."""
    B, C, L = x.shape
    itemsize = x.dtype.itemsize

    # Pack batch elements per grid step so each block is ~2 MiB (streaming-
    # efficient DMA, amortizes per-step overhead); Bt divides B (no partials).
    target_block_bytes = 2 * 1024 * 1024
    bt = _largest_divisor_at_most(B, target_block_bytes // max(C * L * itemsize, 1))
    grid = (B // bt,)

    t_mat = _tridiag_from_taps(w3, C)

    # Explicit VMEM budget: double-buffered in + out blocks, the resident
    # (C, C) conv matrix, plus slack.  Clamped to sane scoped limits.
    block_bytes = bt * C * L * itemsize
    vmem_need = 4 * block_bytes + 2 * C * C * 4 + (2 << 20)
    vmem_limit = int(min(max(vmem_need, 16 * 1024 * 1024), 100 * 1024 * 1024))

    return pl.pallas_call(
        partial(_eca_kernel, inv_l=1.0 / L),
        out_shape=jax.ShapeDtypeStruct((B, C, L), x.dtype),
        grid=grid,
        in_specs=[
            # Native layout; last two block dims == full array dims, so no
            # (8,128) padding and no wrapper transpose/pad/slice at all.
            pl.BlockSpec((bt, C, L), lambda b: (b, 0, 0)),
            # Conv matrix: constant block index -> fetched once, stays resident.
            pl.BlockSpec((C, C), lambda b: (0, 0)),
        ],
        out_specs=pl.BlockSpec((bt, C, L), lambda b: (b, 0, 0)),
        compiler_params=pltpu.CompilerParams(
            dimension_semantics=("parallel",),   # batch blocks shard across TCs
            vmem_limit_bytes=vmem_limit,
        ),
        # NOTE: pipeline_mode=pl.Buffered(3) on the x spec is a further ~5-10%
        # option when VMEM headroom allows; left at the default double buffer.
    )(x, t_mat)


# Pure-JAX reference (mirrors the PyTorch module) for a correctness check.
def eca_reference(x, w3):
    xf = x.astype(jnp.float32)
    m = jnp.mean(xf, axis=2)                                   # (B, C)
    mp = jnp.pad(m, ((0, 0), (1, 1)))                          # zero pad channels
    pre = w3[0] * mp[:, :-2] + w3[1] * mp[:, 1:-1] + w3[2] * mp[:, 2:]
    gate = jax.nn.sigmoid(pre)[:, :, None]                     # (B, C, 1)
    return xf * gate


if __name__ == "__main__":
    key = jax.random.PRNGKey(0)
    kx, kw = jax.random.split(key)
    # Small shapes consistent with the module; deliberately not (8,128)-aligned.
    B, C, L = 2, 100, 80
    x = jax.random.normal(kx, (B, C, L), dtype=jnp.float32)
    w = (0.5 * jax.random.normal(kw, (3,))).astype(jnp.float32)

    # fp32 path
    out = jax.block_until_ready(eca_forward(x, w))
    assert out.shape == (B, C, L), out.shape
    assert out.dtype == x.dtype, out.dtype
    assert bool(jnp.all(jnp.isfinite(out)))
    ref = eca_reference(x, w)
    max_err = float(jnp.max(jnp.abs(out - ref)))
    assert max_err < 2e-3, f"fp32 mismatch vs reference: {max_err}"

    # bf16 path (input dtype preserved end to end)
    xb = x.astype(jnp.bfloat16)
    outb = jax.block_until_ready(eca_forward(xb, w))
    assert outb.dtype == jnp.bfloat16, outb.dtype
    refb = eca_reference(xb.astype(jnp.float32), w)
    max_err_b = float(jnp.max(jnp.abs(outb.astype(jnp.float32) - refb)))
    assert max_err_b < 6e-2, f"bf16 mismatch vs reference: {max_err_b}"

    print("KERNEL_OK")
</pallas_src>

<mosaic_0001>
module attributes {stable_mosaic.version = 11 : i64} {
  func.func @_eca_kernel(%arg0: i32, %arg1: memref<2x100x80xf32, #tpu.memory_space<vmem>>, %arg2: memref<100x100xf32, #tpu.memory_space<vmem>>, %arg3: memref<2x100x80xf32, #tpu.memory_space<vmem>>) attributes {dimension_semantics = [#tpu.dimension_semantics<parallel>], iteration_bounds = array<i64: 1>, scalar_prefetch = 0 : i64, scratch_operands = 0 : i64, tpu.core_type = #tpu.core_type<tc>, window_params = [{transform_indices = @transform_0, window_bounds = array<i64: 2, 100, 80>}, {pipeline_mode = #tpu.pipeline_mode<synchronous>, transform_indices = @transform_1, window_bounds = array<i64: 100, 100>}, {transform_indices = @transform_2, window_bounds = array<i64: 2, 100, 80>}]} {
    %c0 = arith.constant 0 : index
    %c0_0 = arith.constant 0 : index
    %c0_1 = arith.constant 0 : index
    %0 = vector.load %arg1[%c0, %c0_0, %c0_1] : memref<2x100x80xf32, #tpu.memory_space<vmem>>, vector<2x100x80xf32>
    %cst = arith.constant dense<0.000000e+00> : vector<2x100xf32>
    %1 = vector.multi_reduction <add>, %0, %cst [2] : vector<2x100x80xf32> to vector<2x100xf32>
    %cst_2 = arith.constant 1.250000e-02 : f32
    %2 = vector.broadcast %cst_2 : f32 to vector<2x100xf32>
    %3 = arith.mulf %1, %2 : vector<2x100xf32>
    %c0_3 = arith.constant 0 : index
    %c0_4 = arith.constant 0 : index
    %4 = vector.load %arg2[%c0_3, %c0_4] : memref<100x100xf32, #tpu.memory_space<vmem>>, vector<100x100xf32>
    %cst_5 = arith.constant dense<0.000000e+00> : vector<2x100xf32>
    %5 = tpu.matmul %3, %4, %cst_5 {dimension_numbers = #tpu.dot_dimension_numbers<[1], [0], [0], [1], [0, 0, 1, 1], [], []>} : vector<2x100xf32>, vector<100x100xf32>, vector<2x100xf32> -> vector<2x100xf32>
    %cst_6 = arith.constant 0.000000e+00 : f32
    %6 = vector.broadcast %cst_6 : f32 to vector<2x100xf32>
    %7 = arith.subf %6, %5 : vector<2x100xf32>
    %8 = math.exp %7 : vector<2x100xf32>
    %cst_7 = arith.constant 1.000000e+00 : f32
    %9 = vector.broadcast %cst_7 : f32 to vector<2x100xf32>
    %10 = arith.addf %9, %8 : vector<2x100xf32>
    %cst_8 = arith.constant 1.000000e+00 : f32
    %11 = vector.broadcast %cst_8 : f32 to vector<2x100xf32>
    %12 = arith.divf %11, %10 : vector<2x100xf32>
    %c0_9 = arith.constant 0 : index
    %c0_10 = arith.constant 0 : index
    %c0_11 = arith.constant 0 : index
    %13 = vector.load %arg1[%c0_9, %c0_10, %c0_11] : memref<2x100x80xf32, #tpu.memory_space<vmem>>, vector<2x100x80xf32>
    %14 = vector.shape_cast %12 : vector<2x100xf32> to vector<2x100x1xf32>
    %15 = vector.broadcast %14 : vector<2x100x1xf32> to vector<2x100x80xf32>
    %16 = arith.mulf %13, %15 : vector<2x100x80xf32>
    %c0_12 = arith.constant 0 : index
    %c0_13 = arith.constant 0 : index
    %c0_14 = arith.constant 0 : index
    %17 = vector.load %arg3[%c0_12, %c0_13, %c0_14] : memref<2x100x80xf32, #tpu.memory_space<vmem>>, vector<2x100x80xf32>
    tpu.vector_store %arg3[%c0_12, %c0_13, %c0_14], %16 {strides = array<i32>} : memref<2x100x80xf32, #tpu.memory_space<vmem>>, vector<2x100x80xf32>,
    return
  }
  func.func @transform_0(%arg0: i32) -> (i32, i32, i32) {
    %c0_i32 = arith.constant 0 : i32
    %c0_i32_0 = arith.constant 0 : i32
    %c0_i32_1 = arith.constant 0 : i32
    return %arg0, %c0_i32, %c0_i32_0 : i32, i32, i32
  }
  func.func @transform_1(%arg0: i32) -> (i32, i32) {
    %c0_i32 = arith.constant 0 : i32
    %c0_i32_0 = arith.constant 0 : i32
    %c0_i32_1 = arith.constant 0 : i32
    return %c0_i32, %c0_i32_0 : i32, i32
  }
  func.func @transform_2(%arg0: i32) -> (i32, i32, i32) {
    %c0_i32 = arith.constant 0 : i32
    %c0_i32_0 = arith.constant 0 : i32
    %c0_i32_1 = arith.constant 0 : i32
    return %arg0, %c0_i32, %c0_i32_0 : i32, i32, i32
  }
}

</mosaic_0001>

<llo_original>
// kernel: eca_forward.1
$region0: #{eca_forward.1}
  #allocation0 [shape = 'u32[]', space=smem, size = 0x4, offset = 0x4, fixed_abs, tag = 'smem constant byte address 0x4 - core index']
  #allocation1 [shape = 'u32[144,128]{1,0:T(1,128)}', space=vmem, size = 0x12000, scoped, tag = 'internal scratch']
  %s0 = inlined_call_operand.vmem [shape: f32[2,100,80], index: 0, kind: input, shape index: {}]
  %s1 = inlined_call_operand.vmem [shape: f32[100,100], index: 1, kind: input, shape index: {}]
  %s2 = inlined_call_operand.vmem [shape: f32[2,100,80], index: 2, kind: output, shape index: {}]
  %s3 = sld [smem:[#allocation0]]
  $region18: #{eca_forward.1} parent=0
    _
  %s5 = ssub.s32 1, %s3
  %s6 = scalar_select 0, %s5, %s3
  // Predicated region
  $region2: #{eca_forward.1} parent=0 // pred_check
    _
  $region3: #{eca_forward.1} parent=0 // pred_check_branch
    %8 = sbr.rel (0) target = $region5
  $region4: #{eca_forward.1} parent=0 // pred_region
    _
  $region5: #{eca_forward.1} parent=0 // pred_fallthru
    _
  // Predicated region
  $region6: #{eca_forward.1} parent=0 // pred_check
    _
  $region7: #{eca_forward.1} parent=0 // pred_check_branch
    %10 = sbr.rel (0) target = $region9
  $region8: #{eca_forward.1} parent=0 // pred_region
    _
  $region9: #{eca_forward.1} parent=0 // pred_fallthru
    _
  %v11 = vld [vmem:[%s0] sm:$0xff]
  %v12 = vld [vmem:[%s0 + $0x8] sm:$0xff]
  %v13 = vld [vmem:[%s0 + $0x10] sm:$0xff]
  %v14 = vld [vmem:[%s0 + $0x18] sm:$0xff]
  %v15 = vld [vmem:[%s0 + $0x20] sm:$0xff]
  %v16 = vld [vmem:[%s0 + $0x28] sm:$0xff]
  %v17 = vld [vmem:[%s0 + $0x30] sm:$0xff]
  %v18 = vld [vmem:[%s0 + $0x38] sm:$0xff]
  %v19 = vld [vmem:[%s0 + $0x40] sm:$0xff]
  %v20 = vld [vmem:[%s0 + $0x48] sm:$0xff]
  %v21 = vld [vmem:[%s0 + $0x50] sm:$0xff]
  %v22 = vld [vmem:[%s0 + $0x58] sm:$0xff]
  %v23 = vld [vmem:[%s0 + $0x60] sm:$0xf]
  %v24 = vld [vmem:[%s0 + $0x68] sm:$0xff]
  %v25 = vld [vmem:[%s0 + $0x70] sm:$0xff]
  %v26 = vld [vmem:[%s0 + $0x78] sm:$0xff]
  %v27 = vld [vmem:[%s0 + $0x80] sm:$0xff]
  %v28 = vld [vmem:[%s0 + $0x88] sm:$0xff]
  %v29 = vld [vmem:[%s0 + $0x90] sm:$0xff]
  %v30 = vld [vmem:[%s0 + $0x98] sm:$0xff]
  %v31 = vld [vmem:[%s0 + $0xa0] sm:$0xff]
  %v32 = vld [vmem:[%s0 + $0xa8] sm:$0xff]
  %v33 = vld [vmem:[%s0 + $0xb0] sm:$0xff]
  %v34 = vld [vmem:[%s0 + $0xb8] sm:$0xff]
  %v35 = vld [vmem:[%s0 + $0xc0] sm:$0xff]
  %v36 = vld [vmem:[%s0 + $0xc8] sm:$0xf]
  %vm37 = vcmask 654336
  %v38 = vsel %vm37, %v11, 0.0
  %39 = vadd.xlane.f32.xlu0 %v38
  %v40 = vpop.xlane.xlu0 %39
  %v41 = vsel %vm37, %v12, 0.0
  %42 = vadd.xlane.f32.xlu0 %v41
  %v43 = vpop.xlane.xlu0 %42
  %v44 = vsel %vm37, %v13, 0.0
  %45 = vadd.xlane.f32.xlu0 %v44
  %v46 = vpop.xlane.xlu0 %45
  %v47 = vsel %vm37, %v14, 0.0
  %48 = vadd.xlane.f32.xlu0 %v47
  %v49 = vpop.xlane.xlu0 %48
  %v50 = vsel %vm37, %v15, 0.0
  %51 = vadd.xlane.f32.xlu0 %v50
  %v52 = vpop.xlane.xlu0 %51
  %v53 = vsel %vm37, %v16, 0.0
  %54 = vadd.xlane.f32.xlu0 %v53
  %v55 = vpop.xlane.xlu0 %54
  %v56 = vsel %vm37, %v17, 0.0
  %57 = vadd.xlane.f32.xlu0 %v56
  %v58 = vpop.xlane.xlu0 %57
  %v59 = vsel %vm37, %v18, 0.0
  %60 = vadd.xlane.f32.xlu0 %v59
  %v61 = vpop.xlane.xlu0 %60
  %v62 = vsel %vm37, %v19, 0.0
  %63 = vadd.xlane.f32.xlu0 %v62
  %v64 = vpop.xlane.xlu0 %63
  %v65 = vsel %vm37, %v20, 0.0
  %66 = vadd.xlane.f32.xlu0 %v65
  %v67 = vpop.xlane.xlu0 %66
  %v68 = vsel %vm37, %v21, 0.0
  %69 = vadd.xlane.f32.xlu0 %v68
  %v70 = vpop.xlane.xlu0 %69
  %v71 = vsel %vm37, %v22, 0.0
  %72 = vadd.xlane.f32.xlu0 %v71
  %v73 = vpop.xlane.xlu0 %72
  %vm74 = vcmask 650240
  %v75 = vsel %vm74, %v23, 0.0
  %76 = vadd.xlane.f32.xlu0 %v75
  %v77 = vpop.xlane.xlu0 %76
  %v78 = vsel %vm37, %v24, 0.0
  %79 = vadd.xlane.f32.xlu0 %v78
  %v80 = vpop.xlane.xlu0 %79
  %v81 = vsel %vm37, %v25, 0.0
  %82 = vadd.xlane.f32.xlu0 %v81
  %v83 = vpop.xlane.xlu0 %82
  %v84 = vsel %vm37, %v26, 0.0
  %85 = vadd.xlane.f32.xlu0 %v84
  %v86 = vpop.xlane.xlu0 %85
  %v87 = vsel %vm37, %v27, 0.0
  %88 = vadd.xlane.f32.xlu0 %v87
  %v89 = vpop.xlane.xlu0 %88
  %v90 = vsel %vm37, %v28, 0.0
  %91 = vadd.xlane.f32.xlu0 %v90
  %v92 = vpop.xlane.xlu0 %91
  %v93 = vsel %vm37, %v29, 0.0
  %94 = vadd.xlane.f32.xlu0 %v93
  %v95 = vpop.xlane.xlu0 %94
  %v96 = vsel %vm37, %v30, 0.0
  %97 = vadd.xlane.f32.xlu0 %v96
  %v98 = vpop.xlane.xlu0 %97
  %v99 = vsel %vm37, %v31, 0.0
  %100 = vadd.xlane.f32.xlu0 %v99
  %v101 = vpop.xlane.xlu0 %100
  %v102 = vsel %vm37, %v32, 0.0
  %103 = vadd.xlane.f32.xlu0 %v102
  %v104 = vpop.xlane.xlu0 %103
  %v105 = vsel %vm37, %v33, 0.0
  %106 = vadd.xlane.f32.xlu0 %v105
  %v107 = vpop.xlane.xlu0 %106
  %v108 = vsel %vm37, %v34, 0.0
  %109 = vadd.xlane.f32.xlu0 %v108
  %v110 = vpop.xlane.xlu0 %109
  %v111 = vsel %vm37, %v35, 0.0
  %112 = vadd.xlane.f32.xlu0 %v111
  %v113 = vpop.xlane.xlu0 %112
  %v114 = vsel %vm74, %v36, 0.0
  %115 = vadd.xlane.f32.xlu0 %v114
  %v116 = vpop.xlane.xlu0 %115
  %v117 = vmul.f32 %v40, 0.0125
  %v118 = vmul.f32 %v43, 0.0125
  %v119 = vmul.f32 %v46, 0.0125
  %v120 = vmul.f32 %v49, 0.0125
  %v121 = vmul.f32 %v52, 0.0125
  %v122 = vmul.f32 %v55, 0.0125
  %v123 = vmul.f32 %v58, 0.0125
  %v124 = vmul.f32 %v61, 0.0125
  %v125 = vmul.f32 %v64, 0.0125
  %v126 = vmul.f32 %v67, 0.0125
  %v127 = vmul.f32 %v70, 0.0125
  %v128 = vmul.f32 %v73, 0.0125
  %v129 = vmul.f32 %v77, 0.0125
  %v130 = vmul.f32 %v80, 0.0125
  %v131 = vmul.f32 %v83, 0.0125
  %v132 = vmul.f32 %v86, 0.0125
  %v133 = vmul.f32 %v89, 0.0125
  %v134 = vmul.f32 %v92, 0.0125
  %v135 = vmul.f32 %v95, 0.0125
  %v136 = vmul.f32 %v98, 0.0125
  %v137 = vmul.f32 %v101, 0.0125
  %v138 = vmul.f32 %v104, 0.0125
  %v139 = vmul.f32 %v107, 0.0125
  %v140 = vmul.f32 %v110, 0.0125
  %v141 = vmul.f32 %v113, 0.0125
  %v142 = vmul.f32 %v116, 0.0125
  %v143 = vld [vmem:[%s1] sm:$0xff]
  %v144 = vld [vmem:[%s1 + $0x8] sm:$0xff]
  %v145 = vld [vmem:[%s1 + $0x10] sm:$0xff]
  %v146 = vld [vmem:[%s1 + $0x18] sm:$0xff]
  %v147 = vld [vmem:[%s1 + $0x20] sm:$0xff]
  %v148 = vld [vmem:[%s1 + $0x28] sm:$0xff]
  %v149 = vld [vmem:[%s1 + $0x30] sm:$0xff]
  %v150 = vld [vmem:[%s1 + $0x38] sm:$0xff]
  %v151 = vld [vmem:[%s1 + $0x40] sm:$0xff]
  %v152 = vld [vmem:[%s1 + $0x48] sm:$0xff]
  %v153 = vld [vmem:[%s1 + $0x50] sm:$0xff]
  %v154 = vld [vmem:[%s1 + $0x58] sm:$0xff]
  %v155 = vld [vmem:[%s1 + $0x60] sm:$0xf]
  %v182 = vlaneseq
  %v183 = vand.u32 %v182, 127
  %v184 = vlaneseq
  %v185 = vshrl.u32 %v184, 7
  %v186 = vsub.s32 %v183, %v185
  %v187 = vrot.slane %v117, %v186
  %v188 = vadd.s32 %v183, 4294967288
  %v189 = vlaneseq
  %v190 = vshrl.u32 %v189, 7
  %v191 = vsub.s32 %v188, %v190
  %v192 = vrot.slane %v118, %v191
  %vm193 = vcmask 130112
  %v194 = vsel %vm193, %v192, %v187
  %v195 = vadd.s32 %v183, 4294967280
  %v196 = vlaneseq
  %v197 = vshrl.u32 %v196, 7
  %v198 = vsub.s32 %v195, %v197
  %v199 = vrot.slane %v119, %v198
  %vm200 = vcmask 195712
  %v201 = vsel %vm200, %v199, %v194
  %v202 = vadd.s32 %v183, 4294967272
  %v203 = vlaneseq
  %v204 = vshrl.u32 %v203, 7
  %v205 = vsub.s32 %v202, %v204
  %v206 = vrot.slane %v120, %v205
  %vm207 = vcmask 261312
  %v208 = vsel %vm207, %v206, %v201
  %v209 = vadd.s32 %v183, 4294967264
  %v210 = vlaneseq
  %v211 = vshrl.u32 %v210, 7
  %v212 = vsub.s32 %v209, %v211
  %v213 = vrot.slane %v121, %v212
  %vm214 = vcmask 326912
  %v215 = vsel %vm214, %v213, %v208
  %v216 = vadd.s32 %v183, 4294967256
  %v217 = vlaneseq
  %v218 = vshrl.u32 %v217, 7
  %v219 = vsub.s32 %v216, %v218
  %v220 = vrot.slane %v122, %v219
  %vm221 = vcmask 392512
  %v222 = vsel %vm221, %v220, %v215
  %v223 = vadd.s32 %v183, 4294967248
  %v224 = vlaneseq
  %v225 = vshrl.u32 %v224, 7
  %v226 = vsub.s32 %v223, %v225
  %v227 = vrot.slane %v123, %v226
  %vm228 = vcmask 458112
  %v229 = vsel %vm228, %v227, %v222
  %v230 = vadd.s32 %v183, 4294967240
  %v231 = vlaneseq
  %v232 = vshrl.u32 %v231, 7
  %v233 = vsub.s32 %v230, %v232
  %v234 = vrot.slane %v124, %v233
  %vm235 = vcmask 523712
  %v236 = vsel %vm235, %v234, %v229
  %v237 = vadd.s32 %v183, 4294967232
  %v238 = vlaneseq
  %v239 = vshrl.u32 %v238, 7
  %v240 = vsub.s32 %v237, %v239
  %v241 = vrot.slane %v125, %v240
  %vm242 = vcmask 589312
  %v243 = vsel %vm242, %v241, %v236
  %v244 = vadd.s32 %v183, 4294967224
  %v245 = vlaneseq
  %v246 = vshrl.u32 %v245, 7
  %v247 = vsub.s32 %v244, %v246
  %v248 = vrot.slane %v126, %v247
  %vm249 = vcmask 654912
  %v250 = vsel %vm249, %v248, %v243
  %v251 = vadd.s32 %v183, 4294967216
  %v252 = vlaneseq
  %v253 = vshrl.u32 %v252, 7
  %v254 = vsub.s32 %v251, %v253
  %v255 = vrot.slane %v127, %v254
  %vm256 = vcmask 720512
  %v257 = vsel %vm256, %v255, %v250
  %v258 = vadd.s32 %v183, 4294967208
  %v259 = vlaneseq
  %v260 = vshrl.u32 %v259, 7
  %v261 = vsub.s32 %v258, %v260
  %v262 = vrot.slane %v128, %v261
  %vm263 = vcmask 786112
  %v264 = vsel %vm263, %v262, %v257
  %v265 = vadd.s32 %v183, 4294967200
  %v266 = vlaneseq
  %v267 = vshrl.u32 %v266, 7
  %v268 = vsub.s32 %v265, %v267
  %v269 = vrot.slane %v129, %v268
  %vm270 = vcmask 851712
  %v271 = vsel %vm270, %v269, %v264
  %v272 = vlaneseq
  %v273 = vshrl.u32 %v272, 7
  %v274 = vsub.s32 %v183, %v273
  %v275 = vrot.slane %v130, %v274
  %v276 = vlaneseq
  %v277 = vshrl.u32 %v276, 7
  %v278 = vsub.s32 %v188, %v277
  %v279 = vrot.slane %v131, %v278
  %v280 = vsel %vm193, %v279, %v275
  %v281 = vlaneseq
  %v282 = vshrl.u32 %v281, 7
  %v283 = vsub.s32 %v195, %v282
  %v284 = vrot.slane %v132, %v283
  %v285 = vsel %vm200, %v284, %v280
  %v286 = vlaneseq
  %v287 = vshrl.u32 %v286, 7
  %v288 = vsub.s32 %v202, %v287
  %v289 = vrot.slane %v133, %v288
  %v290 = vsel %vm207, %v289, %v285
  %v291 = vlaneseq
  %v292 = vshrl.u32 %v291, 7
  %v293 = vsub.s32 %v209, %v292
  %v294 = vrot.slane %v134, %v293
  %v295 = vsel %vm214, %v294, %v290
  %v296 = vlaneseq
  %v297 = vshrl.u32 %v296, 7
  %v298 = vsub.s32 %v216, %v297
  %v299 = vrot.slane %v135, %v298
  %v300 = vsel %vm221, %v299, %v295
  %v301 = vlaneseq
  %v302 = vshrl.u32 %v301, 7
  %v303 = vsub.s32 %v223, %v302
  %v304 = vrot.slane %v136, %v303
  %v305 = vsel %vm228, %v304, %v300
  %v306 = vlaneseq
  %v307 = vshrl.u32 %v306, 7
  %v308 = vsub.s32 %v230, %v307
  %v309 = vrot.slane %v137, %v308
  %v310 = vsel %vm235, %v309, %v305
  %v311 = vlaneseq
  %v312 = vshrl.u32 %v311, 7
  %v313 = vsub.s32 %v237, %v312
  %v314 = vrot.slane %v138, %v313
  %v315 = vsel %vm242, %v314, %v310
  %v316 = vlaneseq
  %v317 = vshrl.u32 %v316, 7
  %v318 = vsub.s32 %v244, %v317
  %v319 = vrot.slane %v139, %v318
  %v320 = vsel %vm249, %v319, %v315
  %v321 = vlaneseq
  %v322 = vshrl.u32 %v321, 7
  %v323 = vsub.s32 %v251, %v322
  %v324 = vrot.slane %v140, %v323
  %v325 = vsel %vm256, %v324, %v320
  %v326 = vlaneseq
  %v327 = vshrl.u32 %v326, 7
  %v328 = vsub.s32 %v258, %v327
  %v329 = vrot.slane %v141, %v328
  %v330 = vsel %vm263, %v329, %v325
  %v331 = vlaneseq
  %v332 = vshrl.u32 %v331, 7
  %v333 = vsub.s32 %v265, %v332
  %v334 = vrot.slane %v142, %v333
  %v335 = vsel %vm270, %v334, %v330
  %vm336 = vcmask 1041409
  %v337 = vsel %vm336, %v335, %v271
  %vm338 = vcmask 818176
  %v339 = vsel %vm338, %v337, 0
  %vm341 = vcmask 1043456
  %v343 = vsel %vm341, %v155, 0
  %345 = vmatprep.subr.mxu0 0.0
  %346 = vmatpush1.msra.mxu0 0.0
  %347 = vmatprep.subr.mxu0 0.0
  %348 = vmatpush1.msra.mxu0 0.0
  %349 = vmatprep.subr.mxu0 0.0
  %350 = vmatpush1.msra.mxu0 0.0
  %351 = vmatprep.subr.mxu0 0.0
  %352 = vmatpush1.msra.mxu0 %v343
  %353 = vmatprep.subr.mxu0 0.0
  %354 = vmatpush1.msra.mxu0 %v154
  %355 = vmatprep.subr.mxu0 0.0
  %356 = vmatpush1.msra.mxu0 %v153
  %357 = vmatprep.subr.mxu0 0.0
  %358 = vmatpush1.msra.mxu0 %v152
  %359 = vmatprep.subr.mxu0 0.0
  %360 = vmatpush1.msra.mxu0 %v151
  %361 = vmatprep.subr.mxu0 0.0
  %362 = vmatpush1.msra.mxu0 %v150
  %363 = vmatprep.subr.mxu0 0.0
  %364 = vmatpush1.msra.mxu0 %v149
  %365 = vmatprep.subr.mxu0 0.0
  %366 = vmatpush1.msra.mxu0 %v148
  %367 = vmatprep.subr.mxu0 0.0
  %368 = vmatpush1.msra.mxu0 %v147
  %369 = vmatprep.subr.mxu0 0.0
  %370 = vmatpush1.msra.mxu0 %v146
  %371 = vmatprep.subr.mxu0 0.0
  %372 = vmatpush1.msra.mxu0 %v145
  %373 = vmatprep.subr.mxu0 0.0
  %374 = vmatpush1.msra.mxu0 %v144
  %375 = vmatprep.subr.mxu0 0.0
  %376 = vmatpush1.msra.mxu0 %v143
  %377 = vmatprep.subr.mxu0 0.0
  %378 = vmatpush2.msra.mxu0 0.0
  %379 = vmatprep.subr.mxu0 0.0
  %380 = vmatpush2.msra.mxu0 0.0
  %381 = vmatprep.subr.mxu0 0.0
  %382 = vmatpush2.msra.mxu0 0.0
  %383 = vmatprep.subr.mxu0 0.0
  %384 = vmatpush2.msra.mxu0 0.0
  %385 = vmatprep.subr.mxu0 0.0
  %386 = vmatpush2.msra.mxu0 0.0
  %387 = vmatprep.subr.mxu0 0.0
  %388 = vmatpush2.msra.mxu0 0.0
  %389 = vmatprep.subr.mxu0 0.0
  %390 = vmatpush2.msra.mxu0 0.0
  %391 = vmatprep.subr.mxu0 0.0
  %392 = vmatpush2.msra.mxu0 0.0
  %393 = vmatprep.subr.mxu0 0.0
  %394 = vmatpush2.msra.mxu0 0.0
  %395 = vmatprep.subr.mxu0 0.0
  %396 = vmatpush2.msra.mxu0 0.0
  %397 = vmatprep.subr.mxu0 0.0
  %398 = vmatpush2.msra.mxu0 0.0
  %399 = vmatprep.subr.mxu0 0.0
  %400 = vmatpush2.msra.mxu0 0.0
  %401 = vmatprep.subr.mxu0 0.0
  %402 = vmatpush2.msra.mxu0 0.0
  %403 = vmatprep.subr.mxu0 0.0
  %404 = vmatpush2.msra.mxu0 0.0
  %405 = vmatprep.subr.mxu0 0.0
  %406 = vmatpush2.msra.mxu0 0.0
  %407 = vmatprep.subr.mxu0 0.0
  %408 = vmatpush2.msra.mxu0 0.0
  %409 = vmatprep.mubr.f32.mxu0 0.0
  %410 = vmatmul.mubr.f32.gmra.mxu0 %v339
  %v411 = vpop.f32.mrf.mxu0
  %v412 = vadd.f32 0.0, %v411
  %v413 = vpop.f32.mrf.mxu0
  %414 = vdwg.mxu0
  %v415 = vsub.f32 0.0, %v412
  %v416 = vmul.f32 %v415, 1.442695
  %v417 = vpow.pop %v416
  %v418 = vadd.f32 %v417, 1.0
  %v419 = vrcp.pop %v418
  %v420 = vmul.f32 1.0, %v419
  %v421 = vlaneseq
  %v422 = vshrl.u32 %v421, 7
  %v423 = vsub.s32 0, %v422
  %v424 = vrot.slane %v420, %v423
  %426 = vbcast.lane.b32.xlu0 %v424, 256
  %v427 = vpop.permute.xlu0 %426
  %s429 = sor.u32 256, 8
  %430 = vbcast.lane.b32.xlu0 %v424, %s429
  %v431 = vpop.permute.xlu0 %430
  %s433 = sor.u32 256, 16
  %434 = vbcast.lane.b32.xlu0 %v424, %s433
  %v435 = vpop.permute.xlu0 %434
  %s437 = sor.u32 256, 24
  %438 = vbcast.lane.b32.xlu0 %v424, %s437
  %v439 = vpop.permute.xlu0 %438
  %s441 = sor.u32 256, 32
  %442 = vbcast.lane.b32.xlu0 %v424, %s441
  %v443 = vpop.permute.xlu0 %442
  %s445 = sor.u32 256, 40
  %446 = vbcast.lane.b32.xlu0 %v424, %s445
  %v447 = vpop.permute.xlu0 %446
  %s449 = sor.u32 256, 48
  %450 = vbcast.lane.b32.xlu0 %v424, %s449
  %v451 = vpop.permute.xlu0 %450
  %s453 = sor.u32 256, 56
  %454 = vbcast.lane.b32.xlu0 %v424, %s453
  %v455 = vpop.permute.xlu0 %454
  %s457 = sor.u32 256, 64
  %458 = vbcast.lane.b32.xlu0 %v424, %s457
  %v459 = vpop.permute.xlu0 %458
  %s461 = sor.u32 256, 72
  %462 = vbcast.lane.b32.xlu0 %v424, %s461
  %v463 = vpop.permute.xlu0 %462
  %s465 = sor.u32 256, 80
  %466 = vbcast.lane.b32.xlu0 %v424, %s465
  %v467 = vpop.permute.xlu0 %466
  %s469 = sor.u32 256, 88
  %470 = vbcast.lane.b32.xlu0 %v424, %s469
  %v471 = vpop.permute.xlu0 %470
  %s473 = sor.u32 256, 96
  %474 = vbcast.lane.b32.xlu0 %v424, %s473
  %v475 = vpop.permute.xlu0 %474
  %v476 = vlaneseq
  %v477 = vshrl.u32 %v476, 7
  %v478 = vsub.s32 1, %v477
  %v479 = vrot.slane %v420, %v478
  %481 = vbcast.lane.b32.xlu0 %v479, 256
  %v482 = vpop.permute.xlu0 %481
  %s484 = sor.u32 256, 8
  %485 = vbcast.lane.b32.xlu0 %v479, %s484
  %v486 = vpop.permute.xlu0 %485
  %s488 = sor.u32 256, 16
  %489 = vbcast.lane.b32.xlu0 %v479, %s488
  %v490 = vpop.permute.xlu0 %489
  %s492 = sor.u32 256, 24
  %493 = vbcast.lane.b32.xlu0 %v479, %s492
  %v494 = vpop.permute.xlu0 %493
  %s496 = sor.u32 256, 32
  %497 = vbcast.lane.b32.xlu0 %v479, %s496
  %v498 = vpop.permute.xlu0 %497
  %s500 = sor.u32 256, 40
  %501 = vbcast.lane.b32.xlu0 %v479, %s500
  %v502 = vpop.permute.xlu0 %501
  %s504 = sor.u32 256, 48
  %505 = vbcast.lane.b32.xlu0 %v479, %s504
  %v506 = vpop.permute.xlu0 %505
  %s508 = sor.u32 256, 56
  %509 = vbcast.lane.b32.xlu0 %v479, %s508
  %v510 = vpop.permute.xlu0 %509
  %s512 = sor.u32 256, 64
  %513 = vbcast.lane.b32.xlu0 %v479, %s512
  %v514 = vpop.permute.xlu0 %513
  %s516 = sor.u32 256, 72
  %517 = vbcast.lane.b32.xlu0 %v479, %s516
  %v518 = vpop.permute.xlu0 %517
  %s520 = sor.u32 256, 80
  %521 = vbcast.lane.b32.xlu0 %v479, %s520
  %v522 = vpop.permute.xlu0 %521
  %s524 = sor.u32 256, 88
  %525 = vbcast.lane.b32.xlu0 %v479, %s524
  %v526 = vpop.permute.xlu0 %525
  %s528 = sor.u32 256, 96
  %529 = vbcast.lane.b32.xlu0 %v479, %s528
  %v530 = vpop.permute.xlu0 %529
  %v531 = vmul.f32 %v11, %v427
  %v532 = vmul.f32 %v12, %v431
  %v533 = vmul.f32 %v13, %v435
  %v534 = vmul.f32 %v14, %v439
  %v535 = vmul.f32 %v15, %v443
  %v536 = vmul.f32 %v16, %v447
  %v537 = vmul.f32 %v17, %v451
  %v538 = vmul.f32 %v18, %v455
  %v539 = vmul.f32 %v19, %v459
  %v540 = vmul.f32 %v20, %v463
  %v541 = vmul.f32 %v21, %v467
  %v542 = vmul.f32 %v22, %v471
  %v543 = vmul.f32 %v23, %v475
  %v544 = vmul.f32 %v24, %v482
  %v545 = vmul.f32 %v25, %v486
  %v546 = vmul.f32 %v26, %v490
  %v547 = vmul.f32 %v27, %v494
  %v548 = vmul.f32 %v28, %v498
  %v549 = vmul.f32 %v29, %v502
  %v550 = vmul.f32 %v30, %v506
  %v551 = vmul.f32 %v31, %v510
  %v552 = vmul.f32 %v32, %v514
  %v553 = vmul.f32 %v33, %v518
  %v554 = vmul.f32 %v34, %v522
  %v555 = vmul.f32 %v35, %v526
  %v556 = vmul.f32 %v36, %v530
  %557 = vst.msk [vmem:[%s2] sm:$0xff] %vm37, %v531
  %558 = vst.msk [vmem:[%s2 + $0x8] sm:$0xff] %vm37, %v532
  %559 = vst.msk [vmem:[%s2 + $0x10] sm:$0xff] %vm37, %v533
  %560 = vst.msk [vmem:[%s2 + $0x18] sm:$0xff] %vm37, %v534
  %561 = vst.msk [vmem:[%s2 + $0x20] sm:$0xff] %vm37, %v535
  %562 = vst.msk [vmem:[%s2 + $0x28] sm:$0xff] %vm37, %v536
  %563 = vst.msk [vmem:[%s2 + $0x30] sm:$0xff] %vm37, %v537
  %564 = vst.msk [vmem:[%s2 + $0x38] sm:$0xff] %vm37, %v538
  %565 = vst.msk [vmem:[%s2 + $0x40] sm:$0xff] %vm37, %v539
  %566 = vst.msk [vmem:[%s2 + $0x48] sm:$0xff] %vm37, %v540
  %567 = vst.msk [vmem:[%s2 + $0x50] sm:$0xff] %vm37, %v541
  %568 = vst.msk [vmem:[%s2 + $0x58] sm:$0xff] %vm37, %v542
  %569 = vst.msk [vmem:[%s2 + $0x60] sm:$0xf] %vm74, %v543
  %570 = vst.msk [vmem:[%s2 + $0x68] sm:$0xff] %vm37, %v544
  %571 = vst.msk [vmem:[%s2 + $0x70] sm:$0xff] %vm37, %v545
  %572 = vst.msk [vmem:[%s2 + $0x78] sm:$0xff] %vm37, %v546
  %573 = vst.msk [vmem:[%s2 + $0x80] sm:$0xff] %vm37, %v547
  %574 = vst.msk [vmem:[%s2 + $0x88] sm:$0xff] %vm37, %v548
  %575 = vst.msk [vmem:[%s2 + $0x90] sm:$0xff] %vm37, %v549
  %576 = vst.msk [vmem:[%s2 + $0x98] sm:$0xff] %vm37, %v550
  %577 = vst.msk [vmem:[%s2 + $0xa0] sm:$0xff] %vm37, %v551
  %578 = vst.msk [vmem:[%s2 + $0xa8] sm:$0xff] %vm37, %v552
  %579 = vst.msk [vmem:[%s2 + $0xb0] sm:$0xff] %vm37, %v553
  %580 = vst.msk [vmem:[%s2 + $0xb8] sm:$0xff] %vm37, %v554
  %581 = vst.msk [vmem:[%s2 + $0xc0] sm:$0xff] %vm37, %v555
  %582 = vst.msk [vmem:[%s2 + $0xc8] sm:$0xf] %vm74, %v556
  // Predicated region
  $region10: #{eca_forward.1} parent=0 // pred_check
    _
  $region11: #{eca_forward.1} parent=0 // pred_check_branch
    %584 = sbr.rel (0) target = $region13
  $region12: #{eca_forward.1} parent=0 // pred_region
    _
  $region13: #{eca_forward.1} parent=0 // pred_fallthru
    _
  // Predicated region
  $region14: #{eca_forward.1} parent=0 // pred_check
    _
  $region15: #{eca_forward.1} parent=0 // pred_check_branch
    %586 = sbr.rel (0) target = $region17
  $region16: #{eca_forward.1} parent=0 // pred_region
    _
  $region17: #{eca_forward.1} parent=0 // pred_fallthru
    _

</llo_original>
